<compile_context>
chip_gen: v5e
topology: v5e:2x2
jax: 0.10.0
libtpu: 0.0.40
codegen_flags: <defaults>
</compile_context>

<pallas_src>
import functools

import jax
import jax.numpy as jnp
from jax import lax
from jax.experimental import pallas as pl
from jax.experimental.pallas import tpu as pltpu

DEFAULT_SCALE = 32.0
DEFAULT_MARGIN = 0.25
_NORM_EPS = 1e-12  # matches torch.nn.functional.normalize default eps


def _round_up(x, m):
    return ((x + m - 1) // m) * m


def _circle_loss_kernel(feats_r_ref, feats_c_ref, lab_r_ref, lab_c_ref,
                        out_ref, acc_p_ref, acc_n_ref,
                        *, scale, margin, tile, n_valid):
    i = pl.program_id(0)  # row-tile index
    j = pl.program_id(1)  # col-tile index

    @pl.when(jnp.logical_and(i == 0, j == 0))
    def _init():
        acc_p_ref[...] = jnp.zeros_like(acc_p_ref)
        acc_n_ref[...] = jnp.zeros_like(acc_n_ref)

    # Tiles strictly below the diagonal never intersect the strict upper
    # triangle -> skip their compute entirely.
    @pl.when(j >= i)
    def _work():
        xr = feats_r_ref[...].astype(jnp.float32)          # (tile, D)
        xc = feats_c_ref[...].astype(jnp.float32)          # (tile, D)

        # Row-wise L2 normalization (F.normalize, eps clamp on the norm).
        nr = jnp.sqrt(jnp.sum(xr * xr, axis=-1, keepdims=True))
        nc = jnp.sqrt(jnp.sum(xc * xc, axis=-1, keepdims=True))
        xr_n = xr / jnp.maximum(nr, _NORM_EPS)
        xc_n = xc / jnp.maximum(nc, _NORM_EPS)

        # Cosine-similarity tile: (tile, tile) = xr_n @ xc_n.T  (MXU).
        s = lax.dot_general(
            xr_n, xc_n, (((1,), (1,)), ((), ())),
            precision=lax.Precision.HIGHEST,
            preferred_element_type=jnp.float32)

        # Global pair indices for this tile.
        gi = i * tile + lax.broadcasted_iota(jnp.int32, s.shape, 0)
        gj = j * tile + lax.broadcasted_iota(jnp.int32, s.shape, 1)
        upper = gj > gi                                     # triu(diagonal=1)
        in_range = jnp.logical_and(gi < n_valid, gj < n_valid)
        valid = jnp.logical_and(upper, in_range)

        # Same-label mask: (tile,1) == (1,tile) -> (tile,tile).
        same = lab_r_ref[...] == lab_c_ref[...]

        alpha_p = jnp.maximum(1.0 + margin - s, 0.0)
        alpha_n = jnp.maximum(s + margin, 0.0)
        pos_t = jnp.exp(-scale * alpha_p * (s - (1.0 - margin)))
        neg_t = jnp.exp(scale * alpha_n * (s - margin))

        p_mask = jnp.logical_and(valid, same)
        n_mask = jnp.logical_and(valid, jnp.logical_not(same))
        acc_p_ref[...] += jnp.sum(jnp.where(p_mask, pos_t, 0.0), keepdims=True)
        acc_n_ref[...] += jnp.sum(jnp.where(n_mask, neg_t, 0.0), keepdims=True)

    @pl.when(jnp.logical_and(i == pl.num_programs(0) - 1,
                             j == pl.num_programs(1) - 1))
    def _finalize():
        out_ref[...] = jnp.log(1.0 + acc_p_ref[...] * acc_n_ref[...])


def circle_loss(feats, labels, scale=DEFAULT_SCALE, margin=DEFAULT_MARGIN):
    """feats: (N, D) float (f32/bf16); labels: (N,) int. Returns scalar f32 loss."""
    n, d = feats.shape
    assert labels.shape[0] == n, (
        f"feats.size(0): {n} is not equal to labels.size(0): {labels.shape[0]}")

    # Tile choice: single full-extent tile for small N, 128-row tiles otherwise
    # (keeps the (8,128)/(16,128) layout constraints satisfied on all gens and
    #  feature tiles tiny relative to VMEM, incl. v7x's 64 MiB).
    if n <= 128:
        tile = _round_up(n, 8)
    else:
        tile = 128
    n_pad = _round_up(n, tile)
    num_tiles = n_pad // tile

    labels = labels.astype(jnp.int32)
    if n_pad != n:
        feats = jnp.pad(feats, ((0, n_pad - n), (0, 0)))
        labels = jnp.pad(labels, (0, n_pad - n), constant_values=-1)
    lab_row = labels.reshape(n_pad, 1)
    lab_col = labels.reshape(1, n_pad)

    kernel = functools.partial(
        _circle_loss_kernel,
        scale=float(scale), margin=float(margin), tile=tile, n_valid=n)

    itemsize = jnp.dtype(feats.dtype).itemsize
    cost = pl.CostEstimate(
        flops=int(2 * n_pad * n_pad * d + 16 * n_pad * n_pad),
        transcendentals=int(2 * n_pad * n_pad + 2 * n_pad * num_tiles),
        bytes_accessed=int(n_pad * d * itemsize * (num_tiles + 1)
                           + 2 * n_pad * 4 + 4),
    )

    out = pl.pallas_call(
        kernel,
        out_shape=jax.ShapeDtypeStruct((1, 1), jnp.float32),
        grid_spec=pltpu.PrefetchScalarGridSpec(
            num_scalar_prefetch=0,
            grid=(num_tiles, num_tiles),
            in_specs=[
                pl.BlockSpec((tile, d), lambda i, j: (i, 0)),   # row feature tile
                pl.BlockSpec((tile, d), lambda i, j: (j, 0)),   # col feature tile
                pl.BlockSpec((tile, 1), lambda i, j: (i, 0)),   # row labels
                pl.BlockSpec((1, tile), lambda i, j: (0, j)),   # col labels
            ],
            out_specs=pl.BlockSpec((1, 1), lambda i, j: (0, 0)),
            scratch_shapes=[pltpu.VMEM((1, 1), jnp.float32),    # loss_p accumulator
                            pltpu.VMEM((1, 1), jnp.float32)],   # loss_n accumulator
        ),
        compiler_params=pltpu.CompilerParams(
            dimension_semantics=("arbitrary", "arbitrary")),
        cost_estimate=cost,
    )(feats, feats, lab_row, lab_col)
    return out[0, 0]


def _reference(feats, labels, scale=DEFAULT_SCALE, margin=DEFAULT_MARGIN):
    f32 = feats.astype(jnp.float32)
    nrm = jnp.sqrt(jnp.sum(f32 * f32, axis=-1, keepdims=True))
    fn = f32 / jnp.maximum(nrm, _NORM_EPS)
    sim = jnp.matmul(fn, fn.T, precision=jax.lax.Precision.HIGHEST)
    m = labels.shape[0]
    same = labels[:, None] == labels[None, :]
    triu = jnp.triu(jnp.ones((m, m), dtype=bool), k=1)
    alpha_p = jnp.maximum(1.0 + margin - sim, 0.0)
    alpha_n = jnp.maximum(sim + margin, 0.0)
    pos_t = jnp.exp(-scale * alpha_p * (sim - (1.0 - margin)))
    neg_t = jnp.exp(scale * alpha_n * (sim - margin))
    loss_p = jnp.sum(jnp.where(same & triu, pos_t, 0.0))
    loss_n = jnp.sum(jnp.where((~same) & triu, neg_t, 0.0))
    return jnp.log(1.0 + loss_p * loss_n)


if __name__ == "__main__":
    key = jax.random.PRNGKey(0)
    k1, k2, k3, k4, k5, k6 = jax.random.split(key, 6)

    # --- small single-tile case: batch=8 embeddings, hidden=32, 3 classes ---
    N, D, n_cls = 8, 32, 3
    centers = jax.random.normal(k1, (n_cls, D), dtype=jnp.float32)
    labels = jax.random.randint(k2, (N,), 0, n_cls, dtype=jnp.int32)
    feats = centers[labels] + 0.3 * jax.random.normal(k3, (N, D), dtype=jnp.float32)

    out = circle_loss(feats, labels)  # module defaults: scale=32, margin=0.25
    jax.block_until_ready(out)
    ref = _reference(feats, labels)
    assert jnp.allclose(out, ref, rtol=1e-3, atol=1e-3), (out, ref)

    # --- multi-tile / padded / bf16 case exercising the pipelined grid path ---
    N2, D2, n_cls2 = 160, 32, 8
    centers2 = jax.random.normal(k4, (n_cls2, D2), dtype=jnp.float32)
    labels2 = jax.random.randint(k5, (N2,), 0, n_cls2, dtype=jnp.int32)
    feats2 = (centers2[labels2]
              + 0.3 * jax.random.normal(k6, (N2, D2), dtype=jnp.float32)
              ).astype(jnp.bfloat16)

    out2 = circle_loss(feats2, labels2)
    jax.block_until_ready(out2)
    ref2 = _reference(feats2, labels2)
    assert jnp.allclose(out2, ref2, rtol=1e-3, atol=1e-3), (out2, ref2)

    print("KERNEL_OK")
</pallas_src>

<mosaic_0001>
module attributes {stable_mosaic.version = 11 : i64} {
  func.func @_circle_loss_kernel(%arg0: i32, %arg1: i32, %arg2: memref<8x32xf32, #tpu.memory_space<vmem>>, %arg3: memref<8x32xf32, #tpu.memory_space<vmem>>, %arg4: memref<8x1xi32, #tpu.memory_space<vmem>>, %arg5: memref<1x8xi32, #tpu.memory_space<vmem>>, %arg6: memref<1x1xf32, #tpu.memory_space<vmem>>, %arg7: memref<1x1xf32, #tpu.memory_space<vmem>>, %arg8: memref<1x1xf32, #tpu.memory_space<vmem>>) attributes {dimension_semantics = [#tpu.dimension_semantics<arbitrary>, #tpu.dimension_semantics<arbitrary>], iteration_bounds = array<i64: 1, 1>, scalar_prefetch = 0 : i64, scratch_operands = 2 : i64, tpu.core_type = #tpu.core_type<tc>, window_params = [{transform_indices = @transform_0, window_bounds = array<i64: 8, 32>}, {transform_indices = @transform_1, window_bounds = array<i64: 8, 32>}, {transform_indices = @transform_2, window_bounds = array<i64: 8, 1>}, {transform_indices = @transform_3, window_bounds = array<i64: 1, 8>}, {pipeline_mode = #tpu.pipeline_mode<synchronous>, transform_indices = @transform_4, window_bounds = array<i64: 1, 1>}]} {
    %c0_i32 = arith.constant 0 : i32
    %0 = arith.cmpi eq, %arg0, %c0_i32 : i32
    %c0_i32_0 = arith.constant 0 : i32
    %1 = arith.cmpi eq, %arg1, %c0_i32_0 : i32
    %2 = arith.andi %0, %1 : i1
    %3 = arith.extui %2 : i1 to i32
    %c0_i32_1 = arith.constant 0 : i32
    %4 = arith.cmpi ne, %3, %c0_i32_1 : i32
    scf.if %4 {
      %cst = arith.constant 0.000000e+00 : f32
      %13 = vector.broadcast %cst : f32 to vector<1x1xf32>
      %c0 = arith.constant 0 : index
      %c0_6 = arith.constant 0 : index
      %14 = vector.load %arg7[%c0, %c0_6] : memref<1x1xf32, #tpu.memory_space<vmem>>, vector<1x1xf32>
      tpu.vector_store %arg7[%c0, %c0_6], %13 {strides = array<i32>} : memref<1x1xf32, #tpu.memory_space<vmem>>, vector<1x1xf32>,
      %cst_7 = arith.constant 0.000000e+00 : f32
      %15 = vector.broadcast %cst_7 : f32 to vector<1x1xf32>
      %c0_8 = arith.constant 0 : index
      %c0_9 = arith.constant 0 : index
      %16 = vector.load %arg8[%c0_8, %c0_9] : memref<1x1xf32, #tpu.memory_space<vmem>>, vector<1x1xf32>
      tpu.vector_store %arg8[%c0_8, %c0_9], %15 {strides = array<i32>} : memref<1x1xf32, #tpu.memory_space<vmem>>, vector<1x1xf32>,
    } else {
    }
    %5 = arith.cmpi sge, %arg1, %arg0 : i32
    %6 = arith.extui %5 : i1 to i32
    %c0_i32_2 = arith.constant 0 : i32
    %7 = arith.cmpi ne, %6, %c0_i32_2 : i32
    scf.if %7 {
      %c0 = arith.constant 0 : index
      %c0_6 = arith.constant 0 : index
      %13 = vector.load %arg2[%c0, %c0_6] : memref<8x32xf32, #tpu.memory_space<vmem>>, vector<8x32xf32>
      %c0_7 = arith.constant 0 : index
      %c0_8 = arith.constant 0 : index
      %14 = vector.load %arg3[%c0_7, %c0_8] : memref<8x32xf32, #tpu.memory_space<vmem>>, vector<8x32xf32>
      %15 = arith.mulf %13, %13 : vector<8x32xf32>
      %cst = arith.constant dense<0.000000e+00> : vector<8xf32>
      %16 = vector.multi_reduction <add>, %15, %cst [1] : vector<8x32xf32> to vector<8xf32>
      %17 = vector.shape_cast %16 : vector<8xf32> to vector<8x1xf32>
      %18 = math.sqrt %17 : vector<8x1xf32>
      %19 = arith.mulf %14, %14 : vector<8x32xf32>
      %cst_9 = arith.constant dense<0.000000e+00> : vector<8xf32>
      %20 = vector.multi_reduction <add>, %19, %cst_9 [1] : vector<8x32xf32> to vector<8xf32>
      %21 = vector.shape_cast %20 : vector<8xf32> to vector<8x1xf32>
      %22 = math.sqrt %21 : vector<8x1xf32>
      %cst_10 = arith.constant 9.99999996E-13 : f32
      %23 = vector.broadcast %cst_10 : f32 to vector<8x1xf32>
      %24 = arith.maximumf %18, %23 : vector<8x1xf32>
      %25 = vector.broadcast %24 : vector<8x1xf32> to vector<8x32xf32>
      %26 = arith.divf %13, %25 : vector<8x32xf32>
      %cst_11 = arith.constant 9.99999996E-13 : f32
      %27 = vector.broadcast %cst_11 : f32 to vector<8x1xf32>
      %28 = arith.maximumf %22, %27 : vector<8x1xf32>
      %29 = vector.broadcast %28 : vector<8x1xf32> to vector<8x32xf32>
      %30 = arith.divf %14, %29 : vector<8x32xf32>
      %cst_12 = arith.constant dense<0.000000e+00> : vector<8x8xf32>
      %31 = tpu.matmul %26, %30, %cst_12 {dimension_numbers = #tpu.dot_dimension_numbers<[1], [1], [0], [0], [0, 0, 1, 0], [], []>, precision = #tpu.contract_precision<fp32>} : vector<8x32xf32>, vector<8x32xf32>, vector<8x8xf32> -> vector<8x8xf32>
      %c8_i32 = arith.constant 8 : i32
      %32 = arith.muli %arg0, %c8_i32 : i32
      %33 = tpu.iota {dimensions = array<i32: 0>} : vector<8x8xi32>
      %34 = vector.broadcast %32 : i32 to vector<8x8xi32>
      %35 = arith.addi %34, %33 : vector<8x8xi32>
      %c8_i32_13 = arith.constant 8 : i32
      %36 = arith.muli %arg1, %c8_i32_13 : i32
      %37 = tpu.iota {dimensions = array<i32: 1>} : vector<8x8xi32>
      %38 = vector.broadcast %36 : i32 to vector<8x8xi32>
      %39 = arith.addi %38, %37 : vector<8x8xi32>
      %40 = arith.cmpi sgt, %39, %35 : vector<8x8xi32>
      %c8_i32_14 = arith.constant 8 : i32
      %41 = vector.broadcast %c8_i32_14 : i32 to vector<8x8xi32>
      %42 = arith.cmpi slt, %35, %41 : vector<8x8xi32>
      %c8_i32_15 = arith.constant 8 : i32
      %43 = vector.broadcast %c8_i32_15 : i32 to vector<8x8xi32>
      %44 = arith.cmpi slt, %39, %43 : vector<8x8xi32>
      %45 = arith.andi %42, %44 : vector<8x8xi1>
      %46 = arith.andi %40, %45 : vector<8x8xi1>
      %c0_16 = arith.constant 0 : index
      %c0_17 = arith.constant 0 : index
      %47 = vector.load %arg4[%c0_16, %c0_17] : memref<8x1xi32, #tpu.memory_space<vmem>>, vector<8x1xi32>
      %c0_18 = arith.constant 0 : index
      %c0_19 = arith.constant 0 : index
      %48 = vector.load %arg5[%c0_18, %c0_19] : memref<1x8xi32, #tpu.memory_space<vmem>>, vector<1x8xi32>
      %49 = vector.broadcast %47 : vector<8x1xi32> to vector<8x8xi32>
      %50 = vector.broadcast %48 : vector<1x8xi32> to vector<8x8xi32>
      %51 = arith.cmpi eq, %49, %50 : vector<8x8xi32>
      %cst_20 = arith.constant 1.250000e+00 : f32
      %52 = vector.broadcast %cst_20 : f32 to vector<8x8xf32>
      %53 = arith.subf %52, %31 : vector<8x8xf32>
      %cst_21 = arith.constant 0.000000e+00 : f32
      %54 = vector.broadcast %cst_21 : f32 to vector<8x8xf32>
      %55 = arith.maximumf %53, %54 : vector<8x8xf32>
      %cst_22 = arith.constant 2.500000e-01 : f32
      %56 = vector.broadcast %cst_22 : f32 to vector<8x8xf32>
      %57 = arith.addf %31, %56 : vector<8x8xf32>
      %cst_23 = arith.constant 0.000000e+00 : f32
      %58 = vector.broadcast %cst_23 : f32 to vector<8x8xf32>
      %59 = arith.maximumf %57, %58 : vector<8x8xf32>
      %cst_24 = arith.constant -3.200000e+01 : f32
      %60 = vector.broadcast %cst_24 : f32 to vector<8x8xf32>
      %61 = arith.mulf %60, %55 : vector<8x8xf32>
      %cst_25 = arith.constant 7.500000e-01 : f32
      %62 = vector.broadcast %cst_25 : f32 to vector<8x8xf32>
      %63 = arith.subf %31, %62 : vector<8x8xf32>
      %64 = arith.mulf %61, %63 : vector<8x8xf32>
      %65 = math.exp %64 : vector<8x8xf32>
      %cst_26 = arith.constant 3.200000e+01 : f32
      %66 = vector.broadcast %cst_26 : f32 to vector<8x8xf32>
      %67 = arith.mulf %66, %59 : vector<8x8xf32>
      %cst_27 = arith.constant 2.500000e-01 : f32
      %68 = vector.broadcast %cst_27 : f32 to vector<8x8xf32>
      %69 = arith.subf %31, %68 : vector<8x8xf32>
      %70 = arith.mulf %67, %69 : vector<8x8xf32>
      %71 = math.exp %70 : vector<8x8xf32>
      %72 = arith.andi %46, %51 : vector<8x8xi1>
      %cst_28 = arith.constant dense<true> : vector<8x8xi1>
      %73 = arith.xori %51, %cst_28 : vector<8x8xi1>
      %74 = arith.andi %46, %73 : vector<8x8xi1>
      %c0_29 = arith.constant 0 : index
      %c0_30 = arith.constant 0 : index
      %75 = vector.load %arg7[%c0_29, %c0_30] : memref<1x1xf32, #tpu.memory_space<vmem>>, vector<1x1xf32>
      %cst_31 = arith.constant 0.000000e+00 : f32
      %76 = vector.broadcast %cst_31 : f32 to vector<8x8xf32>
      %77 = arith.select %72, %65, %76 : vector<8x8xi1>, vector<8x8xf32>
      %78 = vector.shape_cast %77 : vector<8x8xf32> to vector<1x8x8xf32>
      %cst_32 = arith.constant dense<0.000000e+00> : vector<1xf32>
      %79 = vector.multi_reduction <add>, %78, %cst_32 [1, 2] : vector<1x8x8xf32> to vector<1xf32>
      %80 = vector.shape_cast %79 : vector<1xf32> to vector<1x1x1xf32>
      %81 = vector.extract %80[0, 0, 0] : f32 from vector<1x1x1xf32>
      %82 = vector.broadcast %81 : f32 to vector<1x1xf32>
      %83 = arith.addf %75, %82 : vector<1x1xf32>
      %c0_33 = arith.constant 0 : index
      %c0_34 = arith.constant 0 : index
      %84 = vector.load %arg7[%c0_33, %c0_34] : memref<1x1xf32, #tpu.memory_space<vmem>>, vector<1x1xf32>
      tpu.vector_store %arg7[%c0_33, %c0_34], %83 {strides = array<i32>} : memref<1x1xf32, #tpu.memory_space<vmem>>, vector<1x1xf32>,
      %c0_35 = arith.constant 0 : index
      %c0_36 = arith.constant 0 : index
      %85 = vector.load %arg8[%c0_35, %c0_36] : memref<1x1xf32, #tpu.memory_space<vmem>>, vector<1x1xf32>
      %cst_37 = arith.constant 0.000000e+00 : f32
      %86 = vector.broadcast %cst_37 : f32 to vector<8x8xf32>
      %87 = arith.select %74, %71, %86 : vector<8x8xi1>, vector<8x8xf32>
      %88 = vector.shape_cast %87 : vector<8x8xf32> to vector<1x8x8xf32>
      %cst_38 = arith.constant dense<0.000000e+00> : vector<1xf32>
      %89 = vector.multi_reduction <add>, %88, %cst_38 [1, 2] : vector<1x8x8xf32> to vector<1xf32>
      %90 = vector.shape_cast %89 : vector<1xf32> to vector<1x1x1xf32>
      %91 = vector.extract %90[0, 0, 0] : f32 from vector<1x1x1xf32>
      %92 = vector.broadcast %91 : f32 to vector<1x1xf32>
      %93 = arith.addf %85, %92 : vector<1x1xf32>
      %c0_39 = arith.constant 0 : index
      %c0_40 = arith.constant 0 : index
      %94 = vector.load %arg8[%c0_39, %c0_40] : memref<1x1xf32, #tpu.memory_space<vmem>>, vector<1x1xf32>
      tpu.vector_store %arg8[%c0_39, %c0_40], %93 {strides = array<i32>} : memref<1x1xf32, #tpu.memory_space<vmem>>, vector<1x1xf32>,
    } else {
    }
    %c0_i32_3 = arith.constant 0 : i32
    %8 = arith.cmpi eq, %arg0, %c0_i32_3 : i32
    %c0_i32_4 = arith.constant 0 : i32
    %9 = arith.cmpi eq, %arg1, %c0_i32_4 : i32
    %10 = arith.andi %8, %9 : i1
    %11 = arith.extui %10 : i1 to i32
    %c0_i32_5 = arith.constant 0 : i32
    %12 = arith.cmpi ne, %11, %c0_i32_5 : i32
    scf.if %12 {
      %c0 = arith.constant 0 : index
      %c0_6 = arith.constant 0 : index
      %13 = vector.load %arg7[%c0, %c0_6] : memref<1x1xf32, #tpu.memory_space<vmem>>, vector<1x1xf32>
      %c0_7 = arith.constant 0 : index
      %c0_8 = arith.constant 0 : index
      %14 = vector.load %arg8[%c0_7, %c0_8] : memref<1x1xf32, #tpu.memory_space<vmem>>, vector<1x1xf32>
      %15 = arith.mulf %13, %14 : vector<1x1xf32>
      %cst = arith.constant 1.000000e+00 : f32
      %16 = vector.broadcast %cst : f32 to vector<1x1xf32>
      %17 = arith.addf %16, %15 : vector<1x1xf32>
      %18 = math.log %17 : vector<1x1xf32>
      %c0_9 = arith.constant 0 : index
      %c0_10 = arith.constant 0 : index
      %19 = vector.load %arg6[%c0_9, %c0_10] : memref<1x1xf32, #tpu.memory_space<vmem>>, vector<1x1xf32>
      tpu.vector_store %arg6[%c0_9, %c0_10], %18 {strides = array<i32>} : memref<1x1xf32, #tpu.memory_space<vmem>>, vector<1x1xf32>,
    } else {
    }
    return
  }
  func.func @transform_0(%arg0: i32, %arg1: i32) -> (i32, i32) {
    %c0_i32 = arith.constant 0 : i32
    %c0_i32_0 = arith.constant 0 : i32
    return %arg0, %c0_i32 : i32, i32
  }
  func.func @transform_1(%arg0: i32, %arg1: i32) -> (i32, i32) {
    %c0_i32 = arith.constant 0 : i32
    %c0_i32_0 = arith.constant 0 : i32
    return %arg1, %c0_i32 : i32, i32
  }
  func.func @transform_2(%arg0: i32, %arg1: i32) -> (i32, i32) {
    %c0_i32 = arith.constant 0 : i32
    %c0_i32_0 = arith.constant 0 : i32
    return %arg0, %c0_i32 : i32, i32
  }
  func.func @transform_3(%arg0: i32, %arg1: i32) -> (i32, i32) {
    %c0_i32 = arith.constant 0 : i32
    %c0_i32_0 = arith.constant 0 : i32
    return %c0_i32, %arg1 : i32, i32
  }
  func.func @transform_4(%arg0: i32, %arg1: i32) -> (i32, i32) {
    %c0_i32 = arith.constant 0 : i32
    %c0_i32_0 = arith.constant 0 : i32
    %c0_i32_1 = arith.constant 0 : i32
    return %c0_i32, %c0_i32_0 : i32, i32
  }
}

</mosaic_0001>

<llo_original>
// kernel: tpu_custom_call.1
$region0: #{tpu_custom_call.1}
  #allocation0 [shape = 'u32[]', space=smem, size = 0x4, offset = 0x4, fixed_abs, tag = 'smem constant byte address 0x4 - core index']
  #allocation1 [shape = 'u32[72,128]{1,0:T(1,128)}', space=vmem, size = 0x9000, scoped, tag = 'internal scratch']
  #allocation2 [shape = 'f32[1,1]{1,0:T(1,128)}', space=vmem, size = 0x200, scoped, tag = 'scratch operand']
  #allocation3 [shape = 'f32[1,1]{1,0:T(1,128)}', space=vmem, size = 0x200, scoped, tag = 'scratch operand']
  %s0 = inlined_call_operand.vmem [shape: f32[8,32], index: 0, kind: input, shape index: {}]
  %s1 = inlined_call_operand.hbm [shape: f32[8,32], index: 1, kind: input, shape index: {}]
  %s2 = inlined_call_operand.vmem [shape: s32[8,1], index: 2, kind: input, shape index: {}]
  %s3 = inlined_call_operand.vmem [shape: s32[1,8], index: 3, kind: input, shape index: {}]
  %s4 = inlined_call_operand.hbm [shape: f32[1,1], index: 4, kind: output, shape index: {}]
  %s5 = sld [smem:[#allocation0]]
  $region42: #{tpu_custom_call.1} parent=0
    _
  %s7 = ssub.s32 1, %s5
  %s8 = scalar_select 0, %s7, %s5
  $region1: #{tpu_custom_call.1} parent=0
    #allocation4 [shape = 'u8[4096]{0}', space=vmem, size = 0x1000, scoped, tag = 'input window, operand 1, single buffered']
    #allocation5 [shape = 's32[1]{0}', space=sflag, size = 0x4, scoped, tag = 'scoped memory for tpu_custom_call.1']
    #allocation6 [shape = 's32[1]{0}', space=sflag, size = 0x4, scoped, tag = 'scoped memory for tpu_custom_call.1']
    #allocation7 [shape = 'u8[512]{0}', space=vmem, size = 0x400, scoped, tag = 'output window, operand 0, single buffered']
    %9 = vsyncpa [#allocation5], 0
    %10 = vsyncpa [#allocation6], 0
    // Predicated region
    $region2: #{tpu_custom_call.1} parent=1 // pred_check
      _
    $region3: #{tpu_custom_call.1} parent=1 // pred_check_branch
      %12 = sbr.rel (0) target = $region5
    $region4: #{tpu_custom_call.1} parent=1 // pred_region
      _
    $region5: #{tpu_custom_call.1} parent=1 // pred_fallthru
      _
    // Predicated region
    $region6: #{tpu_custom_call.1} parent=1 // pred_check
      _
    $region7: #{tpu_custom_call.1} parent=1 // pred_check_branch
      %14 = sbr.rel (0) target = $region9
    $region8: #{tpu_custom_call.1} parent=1 // pred_region
      %16 = vsyncadd [#allocation5], 0
      %s18 = sshll.u32 %s1, 4
      %s19 = int_to_ptr.hbm [resolvable:$true] %s18
      %s20 = sshll.u32 [#allocation4], 4
      %s21 = int_to_ptr.vmem [resolvable:$true] %s20
      %23 = dma.hbm_to_vmem [thread:$0]  %s19, 128, %s21, [#allocation5]
    $region9: #{tpu_custom_call.1} parent=1 // pred_fallthru
      _
    // Predicated region
    $region10: #{tpu_custom_call.1} parent=1 // pred_check
      _
    $region11: #{tpu_custom_call.1} parent=1 // pred_check_branch
      %25 = sbr.rel (0) target = $region13
    $region12: #{tpu_custom_call.1} parent=1 // pred_region
      _
    $region13: #{tpu_custom_call.1} parent=1 // pred_fallthru
      _
    // Predicated region
    $region14: #{tpu_custom_call.1} parent=1 // pred_check
      _
    $region15: #{tpu_custom_call.1} parent=1 // pred_check_branch
      %27 = sbr.rel (0) target = $region17
    $region16: #{tpu_custom_call.1} parent=1 // pred_region
      _
    $region17: #{tpu_custom_call.1} parent=1 // pred_fallthru
      _
    // Predicated region
    $region18: #{tpu_custom_call.1} parent=1 // pred_check
      _
    $region19: #{tpu_custom_call.1} parent=1 // pred_check_branch
      %29 = sbr.rel (0) target = $region21
    $region20: #{tpu_custom_call.1} parent=1 // pred_region
      %31 = dma.done [#allocation5], 128
    $region21: #{tpu_custom_call.1} parent=1 // pred_fallthru
      _
    %p32 = scmp.eq.s32.totalorder 0, 0
    %p33 = scmp.eq.s32.totalorder 0, 0
    %p34 = pnand %p32, %p33
    %p35 = pneg %p34
    // Predicated region
    $region22: #{tpu_custom_call.1} parent=1 // pred_check
      _
    $region23: #{tpu_custom_call.1} parent=1 // pred_check_branch
      %37 = sbr.rel (%p34) target = $region25
    $region24: #{tpu_custom_call.1} parent=1 // pred_region
      %vm38 = vcmask 0
      %39 = vst.msk [vmem:[#allocation2] sm:$0x1] %vm38, 0.0
      %40 = vst.msk [vmem:[#allocation3] sm:$0x1] %vm38, 0.0
    $region25: #{tpu_custom_call.1} parent=1 // pred_fallthru
      _
    %p41 = scmp.ge.s32.totalorder 0, 0
    // Predicated region
    $region26: #{tpu_custom_call.1} parent=1 // pred_check
      %p42 = pneg %p41
    $region27: #{tpu_custom_call.1} parent=1 // pred_check_branch
      %44 = sbr.rel (%p42) target = $region29
    $region28: #{tpu_custom_call.1} parent=1 // pred_region
      %v45 = vld [vmem:[%s0] sm:$0xff]
      %v46 = vld [vmem:[#allocation4] sm:$0xff]
      %v47 = vmul.f32 %v45, %v45
      %vm48 = vcmask 261120
      %v49 = vsel %vm48, %v47, 0.0
      %50 = vadd.xlane.f32.xlu0 %v49
      %v51 = vpop.xlane.xlu0 %50
      %v52 = vrsqrt.pop %v51
      %v53 = vmul.f32 %v52, %v51
      %v54 = vmul.f32 %v53, %v52
      %v55 = vmul.f32 0.5, %v54
      %v56 = vsub.f32 1.5, %v55
      %v57 = vmul.f32 %v52, %v56
      %v58 = vmul.f32 %v51, %v57
      %vm59 = vcmp.eq.f32.partialorder %v51, inf
      %v60 = vsel %vm59, %v51, %v58
      %vm61 = vcmp.eq.f32.partialorder %v51, 0.0
      %v62 = vand.u32 %v51, 2147483648
      %v63 = vsel %vm61, %v62, %v60
      %v64 = vmul.f32 %v46, %v46
      %v65 = vsel %vm48, %v64, 0.0
      %66 = vadd.xlane.f32.xlu0 %v65
      %v67 = vpop.xlane.xlu0 %66
      %v68 = vrsqrt.pop %v67
      %v69 = vmul.f32 %v68, %v67
      %v70 = vmul.f32 %v69, %v68
      %v71 = vmul.f32 0.5, %v70
      %v72 = vsub.f32 1.5, %v71
      %v73 = vmul.f32 %v68, %v72
      %v74 = vmul.f32 %v67, %v73
      %vm75 = vcmp.eq.f32.partialorder %v67, inf
      %v76 = vsel %vm75, %v67, %v74
      %vm77 = vcmp.eq.f32.partialorder %v67, 0.0
      %v78 = vand.u32 %v67, 2147483648
      %v79 = vsel %vm77, %v78, %v76
      %v80 = vmax.f32 %v63, 1e-12
      %v81 = vrcp.pop %v80
      %v82 = vmul.f32 %v80, %v81
      %v83 = vsub.f32 1.0, %v82
      %v84 = vmul.f32 %v81, %v83
      %v85 = vadd.f32 %v81, %v84
      %vm86 = vweird.f32 %v80
      %vm87 = vweird.f32 %v81
      %vm88 = vmor %vm86, %vm87
      %v89 = vsel %vm88, %v81, %v85
      %v90 = vand.u32 2147483647, %v80
      %vm91 = vcmp.eq.f32.partialorder %v90, 8.507059e+37
      %v92 = vand.u32 %v80, 2147483648
      %v93 = vor.u32 1.1754944e-38, %v92
      %v94 = vsel %vm91, %v93, %v89
      %v95 = vmul.f32 %v45, %v94
      %v96 = vmax.f32 %v79, 1e-12
      %v97 = vrcp.pop %v96
      %v98 = vmul.f32 %v96, %v97
      %v99 = vsub.f32 1.0, %v98
      %v100 = vmul.f32 %v97, %v99
      %v101 = vadd.f32 %v97, %v100
      %vm102 = vweird.f32 %v96
      %vm103 = vweird.f32 %v97
      %vm104 = vmor %vm102, %vm103
      %v105 = vsel %vm104, %v97, %v101
      %v106 = vand.u32 2147483647, %v96
      %vm107 = vcmp.eq.f32.partialorder %v106, 8.507059e+37
      %v108 = vand.u32 %v96, 2147483648
      %v109 = vor.u32 1.1754944e-38, %v108
      %v110 = vsel %vm107, %v109, %v105
      %v111 = vmul.f32 %v46, %v110
      %v113 = vsel %vm48, %v95, 0
      %v116 = vsel %vm48, %v111, 0
      %118 = vmatpush.xpose.msra.mxu0 0.0
      %119 = vmatpush.xpose.msra.mxu0 0.0
      %120 = vmatpush.xpose.msra.mxu0 0.0
      %121 = vmatpush.xpose.msra.mxu0 0.0
      %122 = vmatpush.xpose.msra.mxu0 0.0
      %123 = vmatpush.xpose.msra.mxu0 0.0
      %124 = vmatpush.xpose.msra.mxu0 0.0
      %125 = vmatpush.xpose.msra.mxu0 0.0
      %126 = vmatpush.xpose.msra.mxu0 0.0
      %127 = vmatpush.xpose.msra.mxu0 0.0
      %128 = vmatpush.xpose.msra.mxu0 0.0
      %129 = vmatpush.xpose.msra.mxu0 0.0
      %130 = vmatpush.xpose.msra.mxu0 0.0
      %131 = vmatpush.xpose.msra.mxu0 0.0
      %132 = vmatpush.xpose.msra.mxu0 0.0
      %v133 = vand.u32 %v116, 4294901760
      %134 = vmatpush.xpose.msra.mxu0 %v133
      %v135 = vand.u32 %v113, 4294901760
      %v136 = vsub.f32 %v113, %v135
      %v137 = vand.u32 %v136, 4294901760
      %v138 = vsub.f32 %v136, %v137
      %v139 = vand.u32 %v138, 4294901760
      %140 = vmatmul.f32.gmra.mxu0 %v139
      %v141 = vpop.f32.mrf.mxu0
      %v142 = vadd.f32 0.0, %v141
      %143 = vdwg.mxu0
      %144 = vmatpush.xpose.msra.mxu0 0.0
      %145 = vmatpush.xpose.msra.mxu0 0.0
      %146 = vmatpush.xpose.msra.mxu0 0.0
      %147 = vmatpush.xpose.msra.mxu0 0.0
      %148 = vmatpush.xpose.msra.mxu0 0.0
      %149 = vmatpush.xpose.msra.mxu0 0.0
      %150 = vmatpush.xpose.msra.mxu0 0.0
      %151 = vmatpush.xpose.msra.mxu0 0.0
      %152 = vmatpush.xpose.msra.mxu0 0.0
      %153 = vmatpush.xpose.msra.mxu0 0.0
      %154 = vmatpush.xpose.msra.mxu0 0.0
      %155 = vmatpush.xpose.msra.mxu0 0.0
      %156 = vmatpush.xpose.msra.mxu0 0.0
      %157 = vmatpush.xpose.msra.mxu0 0.0
      %158 = vmatpush.xpose.msra.mxu0 0.0
      %v159 = vand.u32 %v116, 4294901760
      %v160 = vsub.f32 %v116, %v159
      %v161 = vand.u32 %v160, 4294901760
      %v162 = vsub.f32 %v160, %v161
      %v163 = vand.u32 %v162, 4294901760
      %164 = vmatpush.xpose.msra.mxu0 %v163
      %v165 = vand.u32 %v113, 4294901760
      %166 = vmatmul.f32.gmra.mxu0 %v165
      %v167 = vpop.f32.mrf.mxu0
      %v168 = vadd.f32 %v142, %v167
      %169 = vdwg.mxu0
      %170 = vmatpush.xpose.msra.mxu0 0.0
      %171 = vmatpush.xpose.msra.mxu0 0.0
      %172 = vmatpush.xpose.msra.mxu0 0.0
      %173 = vmatpush.xpose.msra.mxu0 0.0
      %174 = vmatpush.xpose.msra.mxu0 0.0
      %175 = vmatpush.xpose.msra.mxu0 0.0
      %176 = vmatpush.xpose.msra.mxu0 0.0
      %177 = vmatpush.xpose.msra.mxu0 0.0
      %178 = vmatpush.xpose.msra.mxu0 0.0
      %179 = vmatpush.xpose.msra.mxu0 0.0
      %180 = vmatpush.xpose.msra.mxu0 0.0
      %181 = vmatpush.xpose.msra.mxu0 0.0
      %182 = vmatpush.xpose.msra.mxu0 0.0
      %183 = vmatpush.xpose.msra.mxu0 0.0
      %184 = vmatpush.xpose.msra.mxu0 0.0
      %v185 = vand.u32 %v116, 4294901760
      %v186 = vsub.f32 %v116, %v185
      %187 = vmatpush.xpose.msra.mxu0 %v186
      %v188 = vand.u32 %v113, 4294901760
      %v189 = vsub.f32 %v113, %v188
      %190 = vmatmul.f32.gmra.mxu0 %v189
      %v191 = vpop.f32.mrf.mxu0
      %v192 = vadd.f32 %v168, %v191
      %193 = vdwg.mxu0
      %194 = vmatpush.xpose.msra.mxu0 0.0
      %195 = vmatpush.xpose.msra.mxu0 0.0
      %196 = vmatpush.xpose.msra.mxu0 0.0
      %197 = vmatpush.xpose.msra.mxu0 0.0
      %198 = vmatpush.xpose.msra.mxu0 0.0
      %199 = vmatpush.xpose.msra.mxu0 0.0
      %200 = vmatpush.xpose.msra.mxu0 0.0
      %201 = vmatpush.xpose.msra.mxu0 0.0
      %202 = vmatpush.xpose.msra.mxu0 0.0
      %203 = vmatpush.xpose.msra.mxu0 0.0
      %204 = vmatpush.xpose.msra.mxu0 0.0
      %205 = vmatpush.xpose.msra.mxu0 0.0
      %206 = vmatpush.xpose.msra.mxu0 0.0
      %207 = vmatpush.xpose.msra.mxu0 0.0
      %208 = vmatpush.xpose.msra.mxu0 0.0
      %v209 = vand.u32 %v116, 4294901760
      %210 = vmatpush.xpose.msra.mxu0 %v209
      %v211 = vand.u32 %v113, 4294901760
      %v212 = vsub.f32 %v113, %v211
      %v213 = vand.u32 %v212, 4294901760
      %214 = vmatmul.f32.gmra.mxu0 %v213
      %v215 = vpop.f32.mrf.mxu0
      %v216 = vadd.f32 %v192, %v215
      %217 = vdwg.mxu0
      %218 = vmatpush.xpose.msra.mxu0 0.0
      %219 = vmatpush.xpose.msra.mxu0 0.0
      %220 = vmatpush.xpose.msra.mxu0 0.0
      %221 = vmatpush.xpose.msra.mxu0 0.0
      %222 = vmatpush.xpose.msra.mxu0 0.0
      %223 = vmatpush.xpose.msra.mxu0 0.0
      %224 = vmatpush.xpose.msra.mxu0 0.0
      %225 = vmatpush.xpose.msra.mxu0 0.0
      %226 = vmatpush.xpose.msra.mxu0 0.0
      %227 = vmatpush.xpose.msra.mxu0 0.0
      %228 = vmatpush.xpose.msra.mxu0 0.0
      %229 = vmatpush.xpose.msra.mxu0 0.0
      %230 = vmatpush.xpose.msra.mxu0 0.0
      %231 = vmatpush.xpose.msra.mxu0 0.0
      %232 = vmatpush.xpose.msra.mxu0 0.0
      %v233 = vand.u32 %v116, 4294901760
      %v234 = vsub.f32 %v116, %v233
      %v235 = vand.u32 %v234, 4294901760
      %236 = vmatpush.xpose.msra.mxu0 %v235
      %v237 = vand.u32 %v113, 4294901760
      %238 = vmatmul.f32.gmra.mxu0 %v237
      %v239 = vpop.f32.mrf.mxu0
      %v240 = vadd.f32 %v216, %v239
      %241 = vdwg.mxu0
      %242 = vmatpush.xpose.msra.mxu0 0.0
      %243 = vmatpush.xpose.msra.mxu0 0.0
      %244 = vmatpush.xpose.msra.mxu0 0.0
      %245 = vmatpush.xpose.msra.mxu0 0.0
      %246 = vmatpush.xpose.msra.mxu0 0.0
      %247 = vmatpush.xpose.msra.mxu0 0.0
      %248 = vmatpush.xpose.msra.mxu0 0.0
      %249 = vmatpush.xpose.msra.mxu0 0.0
      %250 = vmatpush.xpose.msra.mxu0 0.0
      %251 = vmatpush.xpose.msra.mxu0 0.0
      %252 = vmatpush.xpose.msra.mxu0 0.0
      %253 = vmatpush.xpose.msra.mxu0 0.0
      %254 = vmatpush.xpose.msra.mxu0 0.0
      %255 = vmatpush.xpose.msra.mxu0 0.0
      %256 = vmatpush.xpose.msra.mxu0 0.0
      %v257 = vand.u32 %v116, 4294901760
      %258 = vmatpush.xpose.msra.mxu0 %v257
      %v259 = vand.u32 %v113, 4294901760
      %260 = vmatmul.f32.gmra.mxu0 %v259
      %v261 = vpop.f32.mrf.mxu0
      %v262 = vadd.f32 %v240, %v261
      %263 = vdwg.mxu0
      %s264 = smul.u32 0, 8
      %v265 = vlaneseq
      %v266 = vshrl.u32 %v265, 7
      %v267 = vstv %s264
      %v268 = vadd.s32 %v267, %v266
      %s269 = smul.u32 0, 8
      %v270 = vlaneseq
      %v271 = vand.u32 %v270, 127
      %v272 = vstv %s269
      %v273 = vadd.s32 %v272, %v271
      %vm274 = vcmp.gt.s32.totalorder %v273, %v268
      %vm275 = vcmp.lt.s32.totalorder %v268, 8
      %vm276 = vcmp.lt.s32.totalorder %v273, 8
      %vm277 = vmand %vm275, %vm276
      %vm278 = vmand %vm274, %vm277
      %v279 = vld [vmem:[%s2] sm:$0xff]
      %v280 = vld [vmem:[%s3] sm:$0x1]
      %281 = vset.pattern.permute.xlu0 0
      %282 = vperm.xlu0 %281, %v279
      %v283 = vpop.permute.xlu0 %282
      %v284 = vperm.slane %v280, 0
      %vm285 = vcmp.eq.s32.totalorder %v283, %v284
      %v286 = vsub.f32 1.25, %v262
      %v287 = vmax.f32 %v286, 0.0
      %v288 = vadd.f32 %v262, 0.25
      %v289 = vmax.f32 %v288, 0.0
      %v290 = vmul.f32 %v287, -32.0
      %v291 = vsub.f32 %v262, 0.75
      %v292 = vmul.f32 %v290, %v291
      %v293 = vmul.f32 %v292, 1.442695
      %v294 = vpow.pop %v293
      %v295 = vmul.f32 %v289, 32.0
      %v296 = vsub.f32 %v262, 0.25
      %v297 = vmul.f32 %v295, %v296
      %v298 = vmul.f32 %v297, 1.442695
      %v299 = vpow.pop %v298
      %vm300 = vmand %vm278, %vm285
      %vm301 = vmxor %vm285, 1
      %vm302 = vmand %vm278, %vm301
      %v303 = vld [vmem:[#allocation2] sm:$0x1]
      %v304 = vsel %vm300, %v294, 0.0
      %vm305 = vcmask 64512
      %v306 = vsel %vm305, %v304, 0.0
      %307 = vadd.xlane.f32.xlu0 %v306
      %v308 = vpop.xlane.xlu0 %307
      %v309 = vrot.slane %v308, 4
      %v310 = vadd.f32 %v308, %v309
      %v311 = vrot.slane %v310, 2
      %v312 = vadd.f32 %v310, %v311
      %v313 = vrot.slane %v312, 1
      %v314 = vadd.f32 %v312, %v313
      %s315 = vtos %v314
      %v316 = vstv %s315
      %v317 = vadd.f32 %v303, %v316
      %vm318 = vcmask 0
      %319 = vst.msk [vmem:[#allocation2] sm:$0x1] %vm318, %v317
      %v320 = vld [vmem:[#allocation3] sm:$0x1]
      %v321 = vsel %vm302, %v299, 0.0
      %v322 = vsel %vm305, %v321, 0.0
      %323 = vadd.xlane.f32.xlu0 %v322
      %v324 = vpop.xlane.xlu0 %323
      %v325 = vrot.slane %v324, 4
      %v326 = vadd.f32 %v324, %v325
      %v327 = vrot.slane %v326, 2
      %v328 = vadd.f32 %v326, %v327
      %v329 = vrot.slane %v328, 1
      %v330 = vadd.f32 %v328, %v329
      %s331 = vtos %v330
      %v332 = vstv %s331
      %v333 = vadd.f32 %v320, %v332
      %334 = vst.msk [vmem:[#allocation3] sm:$0x1] %vm318, %v333
    $region29: #{tpu_custom_call.1} parent=1 // pred_fallthru
      _
    // Predicated region
    $region30: #{tpu_custom_call.1} parent=1 // pred_check
      _
    $region31: #{tpu_custom_call.1} parent=1 // pred_check_branch
      %336 = sbr.rel (%p34) target = $region33
    $region32: #{tpu_custom_call.1} parent=1 // pred_region
      %v337 = vld [vmem:[#allocation2] sm:$0x1]
      %v338 = vld [vmem:[#allocation3] sm:$0x1]
      %v339 = vmul.f32 %v337, %v338
      %v340 = vadd.f32 %v339, 1.0
      %v341 = vlog2.pop %v340
      %v342 = vmul.f32 %v341, 0.6931472
      %vm343 = vcmask 0
      %344 = vst.msk [vmem:[#allocation7] sm:$0x1] %vm343, %v342
    $region33: #{tpu_custom_call.1} parent=1 // pred_fallthru
      _
    // Predicated region
    $region34: #{tpu_custom_call.1} parent=1 // pred_check
      _
    $region35: #{tpu_custom_call.1} parent=1 // pred_check_branch
      %346 = sbr.rel (0) target = $region37
    $region36: #{tpu_custom_call.1} parent=1 // pred_region
      %348 = vsyncadd [#allocation6], 0
      %s350 = sshll.u32 [#allocation7], 4
      %s351 = int_to_ptr.vmem [resolvable:$true] %s350
      %s352 = sshll.u32 %s4, 4
      %s353 = int_to_ptr.hbm [resolvable:$true] %s352
      %355 = dma.vmem_to_hbm [thread:$0]  %s351, 16, %s353, [#allocation6]
    $region37: #{tpu_custom_call.1} parent=1 // pred_fallthru
      _
    // Predicated region
    $region38: #{tpu_custom_call.1} parent=1 // pred_check
      _
    $region39: #{tpu_custom_call.1} parent=1 // pred_check_branch
      %357 = sbr.rel (0) target = $region41
    $region40: #{tpu_custom_call.1} parent=1 // pred_region
      %359 = dma.done [#allocation6], 16
    $region41: #{tpu_custom_call.1} parent=1 // pred_fallthru
      _
    %360 = vsyncpa [#allocation5], 1
    %361 = vsyncpa [#allocation6], 1

</llo_original>
